<compile_context>
chip_gen: v7x
topology: tpu7x:2x2x1
jax: 0.10.0
libtpu: 0.0.40
codegen_flags: <defaults>
</compile_context>

<pallas_src>
import functools

import jax
import jax.numpy as jnp
from jax.experimental import pallas as pl
from jax.experimental.pallas import tpu as pltpu


def _is_dual_tensorcore_chip():
    """True on chips with two TensorCores (v7x); keep the batch axis 'parallel'
    there. Single-TC parts (v5e/v6e) collapse the grid to one step instead."""
    try:
        kind = jax.devices()[0].device_kind.lower()
    except Exception:
        return False
    return ("v7" in kind) or ("tpu7" in kind)


def _nodeselection_kernel(emb_ref, feat_ref, sel_ref, idx_ref, *, M, N, D, K, BB):
    """One grid step == BB batch elements.

    emb_ref : (M, D)          node_embeddings (resident every step)
    feat_ref: (BB, N, D)      node_feature block
    sel_ref : (BB, M, K*D)    selected node features, lane-dense (K*D = 128)
    idx_ref : (BB, M, K)      top-k node indices (tiny masked store, accepted)
    """
    emb = emb_ref[...]                                            # (M, D)
    col = jax.lax.broadcasted_iota(jnp.int32, (M, N), 1)
    neg_inf = jnp.float32(-jnp.inf)

    for b in range(BB):                                           # static unroll
        feat = feat_ref[b]                                        # (N, D)

        # logits[m, n] = sum_d emb[m, d] * feat[n, d]   -> MXU
        logits = jax.lax.dot_general(
            emb, feat, (((1,), (1,)), ((), ())),
            preferred_element_type=jnp.float32)                   # (M, N)

        # top-K (largest, sorted) directly on logits via K argmax passes.
        # Softmax is monotone along axis=-1, so indices/gathered features are
        # identical to softmax-then-topk; mask with -inf (logits can be < 0).
        scores = logits
        idx_cols = []
        onehots = []
        for k in range(K):
            cur = jnp.max(scores, axis=-1, keepdims=True)         # (M, 1)
            hit = scores >= cur
            idx_k = jnp.min(jnp.where(hit, col, N), axis=-1,
                            keepdims=True)                        # first max index
            idx_cols.append(idx_k)
            sel_mask = col == idx_k                               # (M, N)
            onehots.append(sel_mask.astype(feat.dtype))
            scores = jnp.where(sel_mask, neg_inf, scores)

        # Fuse the K one-hot gathers into a single MXU matmul:
        #   (K*M, N) @ (N, D) -> (K*M, D), then lay out lane-dense as (M, K*D).
        oh_all = jnp.concatenate(onehots, axis=0)                 # (K*M, N)
        gathered = jnp.dot(oh_all, feat,
                           preferred_element_type=jnp.float32)    # (K*M, D)
        sel = jnp.concatenate(
            [gathered[k * M:(k + 1) * M, :] for k in range(K)],
            axis=1)                                               # (M, K*D)
        sel_ref[b] = sel.astype(sel_ref.dtype)                    # one 128-lane store
        idx_ref[b] = jnp.concatenate(idx_cols, axis=-1)           # (M, K)


def nodeselection_forward(node_feature, node_embeddings, topk, batch_block=None):
    """JAX/Pallas equivalent of nodeselection.forward."""
    B, N, D = node_feature.shape
    M, D2 = node_embeddings.shape
    assert D == D2
    K = topk
    assert K <= N, "topk must be <= number of nodes"

    # Grid strategy: v7x shards the batch axis across its two TensorCores;
    # single-TC chips process the whole batch in one grid step.
    if batch_block is None:
        batch_block = 1 if _is_dual_tensorcore_chip() else B
    if B % batch_block != 0:
        batch_block = 1
    BB = batch_block
    G = B // BB

    # NOTE: single-block over N is fine at these sizes; if N grows large, add a
    # second grid axis tiling N with an online top-K merge in VMEM scratch.
    kernel = functools.partial(_nodeselection_kernel, M=M, N=N, D=D, K=K, BB=BB)

    sel_flat, indices = pl.pallas_call(
        kernel,
        grid=(G,),
        in_specs=[
            pl.BlockSpec((M, D), lambda g: (0, 0)),          # node_embeddings (shared)
            pl.BlockSpec((BB, N, D), lambda g: (g, 0, 0)),   # node_feature block
        ],
        out_specs=[
            pl.BlockSpec((BB, M, K * D), lambda g: (g, 0, 0)),
            pl.BlockSpec((BB, M, K), lambda g: (g, 0, 0)),
        ],
        out_shape=[
            jax.ShapeDtypeStruct((B, M, K * D), node_feature.dtype),
            jax.ShapeDtypeStruct((B, M, K), jnp.int32),
        ],
        compiler_params=pltpu.CompilerParams(
            dimension_semantics=("parallel",)),
    )(node_embeddings, node_feature)

    # Free contiguous reshape (no transpose / extra HBM round trip).
    selected = sel_flat.reshape(B, M, K, D)
    batch_indices = jnp.broadcast_to(
        jnp.arange(B, dtype=jnp.int32)[:, None, None], (B, M, K))
    return selected, batch_indices, indices


if __name__ == "__main__":
    # module hyper-params: topk=4, memory_node=8, time_dim=32; input batch=2, nodes=16
    B, N, D, M, K = 2, 16, 32, 8, 4

    key = jax.random.PRNGKey(0)
    k_feat, k_emb = jax.random.split(key)
    node_feature = jax.random.normal(k_feat, (B, N, D), dtype=jnp.float32)
    # deterministic stand-in for nn.Parameter(torch.randn(memory_node, time_dim))
    node_embeddings = jax.random.normal(k_emb, (M, D), dtype=jnp.float32)

    fwd = jax.jit(functools.partial(nodeselection_forward, topk=K))
    selected, batch_indices, indices = fwd(node_feature, node_embeddings)
    jax.block_until_ready((selected, batch_indices, indices))

    # pure-JAX reference check (softmax kept in the reference; top-k is
    # monotone-invariant so indices/features must match the kernel).
    scores_ref = jax.nn.softmax(
        jnp.einsum("md,bnd->bmn", node_embeddings, node_feature), axis=-1)
    _, idx_ref = jax.lax.top_k(scores_ref, K)
    sel_ref = node_feature[jnp.arange(B)[:, None, None], idx_ref]
    bidx_ref = jnp.broadcast_to(jnp.arange(B)[:, None, None], (B, M, K))

    assert jnp.array_equal(indices, idx_ref.astype(jnp.int32)), "index mismatch"
    assert jnp.array_equal(batch_indices, bidx_ref.astype(jnp.int32)), "batch idx mismatch"
    assert jnp.allclose(selected, sel_ref, atol=1e-5, rtol=1e-5), "feature mismatch"

    print("KERNEL_OK")
</pallas_src>

<mosaic_0001>
module attributes {stable_mosaic.version = 11 : i64} {
  func.func @_nodeselection_kernel(%arg0: i32, %arg1: memref<8x32xf32, #tpu.memory_space<vmem>>, %arg2: memref<2x16x32xf32, #tpu.memory_space<vmem>>, %arg3: memref<2x8x128xf32, #tpu.memory_space<vmem>>, %arg4: memref<2x8x4xi32, #tpu.memory_space<vmem>>) attributes {dimension_semantics = [#tpu.dimension_semantics<parallel>], iteration_bounds = array<i64: 1>, scalar_prefetch = 0 : i64, scratch_operands = 0 : i64, tpu.core_type = #tpu.core_type<tc>, window_params = [{pipeline_mode = #tpu.pipeline_mode<synchronous>, transform_indices = @transform_0, window_bounds = array<i64: 8, 32>}, {transform_indices = @transform_1, window_bounds = array<i64: 2, 16, 32>}, {transform_indices = @transform_2, window_bounds = array<i64: 2, 8, 128>}, {transform_indices = @transform_3, window_bounds = array<i64: 2, 8, 4>}]} {
    %c0 = arith.constant 0 : index
    %c0_0 = arith.constant 0 : index
    %0 = vector.load %arg1[%c0, %c0_0] : memref<8x32xf32, #tpu.memory_space<vmem>>, vector<8x32xf32>
    %1 = tpu.iota {dimensions = array<i32: 1>} : vector<8x16xi32>
    %c0_1 = arith.constant 0 : index
    %c0_2 = arith.constant 0 : index
    %c0_3 = arith.constant 0 : index
    %2 = vector.load %arg2[%c0_1, %c0_2, %c0_3] : memref<2x16x32xf32, #tpu.memory_space<vmem>>, vector<1x16x32xf32>
    %3 = vector.shape_cast %2 : vector<1x16x32xf32> to vector<16x32xf32>
    %cst = arith.constant dense<0.000000e+00> : vector<8x16xf32>
    %4 = tpu.matmul %0, %3, %cst {dimension_numbers = #tpu.dot_dimension_numbers<[1], [1], [0], [0], [0, 0, 1, 0], [], []>} : vector<8x32xf32>, vector<16x32xf32>, vector<8x16xf32> -> vector<8x16xf32>
    %cst_4 = arith.constant dense<0xFF800000> : vector<8xf32>
    %5 = vector.multi_reduction <maximumf>, %4, %cst_4 [1] : vector<8x16xf32> to vector<8xf32>
    %6 = vector.shape_cast %5 : vector<8xf32> to vector<8x1xf32>
    %7 = vector.broadcast %6 : vector<8x1xf32> to vector<8x16xf32>
    %8 = arith.cmpf oge, %4, %7 : vector<8x16xf32>
    %c16_i32 = arith.constant 16 : i32
    %9 = vector.broadcast %c16_i32 : i32 to vector<8x16xi32>
    %10 = arith.select %8, %1, %9 : vector<8x16xi1>, vector<8x16xi32>
    %cst_5 = arith.constant dense<2147483647> : vector<8xi32>
    %11 = vector.multi_reduction <minsi>, %10, %cst_5 [1] : vector<8x16xi32> to vector<8xi32>
    %12 = vector.shape_cast %11 : vector<8xi32> to vector<8x1xi32>
    %13 = vector.broadcast %12 : vector<8x1xi32> to vector<8x16xi32>
    %14 = arith.cmpi eq, %1, %13 : vector<8x16xi32>
    %15 = arith.extui %14 : vector<8x16xi1> to vector<8x16xi32>
    %16 = arith.sitofp %15 : vector<8x16xi32> to vector<8x16xf32>
    %cst_6 = arith.constant 0xFF800000 : f32
    %17 = vector.broadcast %cst_6 : f32 to vector<8x16xf32>
    %18 = arith.select %14, %17, %4 : vector<8x16xi1>, vector<8x16xf32>
    %cst_7 = arith.constant dense<0xFF800000> : vector<8xf32>
    %19 = vector.multi_reduction <maximumf>, %18, %cst_7 [1] : vector<8x16xf32> to vector<8xf32>
    %20 = vector.shape_cast %19 : vector<8xf32> to vector<8x1xf32>
    %21 = vector.broadcast %20 : vector<8x1xf32> to vector<8x16xf32>
    %22 = arith.cmpf oge, %18, %21 : vector<8x16xf32>
    %c16_i32_8 = arith.constant 16 : i32
    %23 = vector.broadcast %c16_i32_8 : i32 to vector<8x16xi32>
    %24 = arith.select %22, %1, %23 : vector<8x16xi1>, vector<8x16xi32>
    %cst_9 = arith.constant dense<2147483647> : vector<8xi32>
    %25 = vector.multi_reduction <minsi>, %24, %cst_9 [1] : vector<8x16xi32> to vector<8xi32>
    %26 = vector.shape_cast %25 : vector<8xi32> to vector<8x1xi32>
    %27 = vector.broadcast %26 : vector<8x1xi32> to vector<8x16xi32>
    %28 = arith.cmpi eq, %1, %27 : vector<8x16xi32>
    %29 = arith.extui %28 : vector<8x16xi1> to vector<8x16xi32>
    %30 = arith.sitofp %29 : vector<8x16xi32> to vector<8x16xf32>
    %cst_10 = arith.constant 0xFF800000 : f32
    %31 = vector.broadcast %cst_10 : f32 to vector<8x16xf32>
    %32 = arith.select %28, %31, %18 : vector<8x16xi1>, vector<8x16xf32>
    %cst_11 = arith.constant dense<0xFF800000> : vector<8xf32>
    %33 = vector.multi_reduction <maximumf>, %32, %cst_11 [1] : vector<8x16xf32> to vector<8xf32>
    %34 = vector.shape_cast %33 : vector<8xf32> to vector<8x1xf32>
    %35 = vector.broadcast %34 : vector<8x1xf32> to vector<8x16xf32>
    %36 = arith.cmpf oge, %32, %35 : vector<8x16xf32>
    %c16_i32_12 = arith.constant 16 : i32
    %37 = vector.broadcast %c16_i32_12 : i32 to vector<8x16xi32>
    %38 = arith.select %36, %1, %37 : vector<8x16xi1>, vector<8x16xi32>
    %cst_13 = arith.constant dense<2147483647> : vector<8xi32>
    %39 = vector.multi_reduction <minsi>, %38, %cst_13 [1] : vector<8x16xi32> to vector<8xi32>
    %40 = vector.shape_cast %39 : vector<8xi32> to vector<8x1xi32>
    %41 = vector.broadcast %40 : vector<8x1xi32> to vector<8x16xi32>
    %42 = arith.cmpi eq, %1, %41 : vector<8x16xi32>
    %43 = arith.extui %42 : vector<8x16xi1> to vector<8x16xi32>
    %44 = arith.sitofp %43 : vector<8x16xi32> to vector<8x16xf32>
    %cst_14 = arith.constant 0xFF800000 : f32
    %45 = vector.broadcast %cst_14 : f32 to vector<8x16xf32>
    %46 = arith.select %42, %45, %32 : vector<8x16xi1>, vector<8x16xf32>
    %cst_15 = arith.constant dense<0xFF800000> : vector<8xf32>
    %47 = vector.multi_reduction <maximumf>, %46, %cst_15 [1] : vector<8x16xf32> to vector<8xf32>
    %48 = vector.shape_cast %47 : vector<8xf32> to vector<8x1xf32>
    %49 = vector.broadcast %48 : vector<8x1xf32> to vector<8x16xf32>
    %50 = arith.cmpf oge, %46, %49 : vector<8x16xf32>
    %c16_i32_16 = arith.constant 16 : i32
    %51 = vector.broadcast %c16_i32_16 : i32 to vector<8x16xi32>
    %52 = arith.select %50, %1, %51 : vector<8x16xi1>, vector<8x16xi32>
    %cst_17 = arith.constant dense<2147483647> : vector<8xi32>
    %53 = vector.multi_reduction <minsi>, %52, %cst_17 [1] : vector<8x16xi32> to vector<8xi32>
    %54 = vector.shape_cast %53 : vector<8xi32> to vector<8x1xi32>
    %55 = vector.broadcast %54 : vector<8x1xi32> to vector<8x16xi32>
    %56 = arith.cmpi eq, %1, %55 : vector<8x16xi32>
    %57 = arith.extui %56 : vector<8x16xi1> to vector<8x16xi32>
    %58 = arith.sitofp %57 : vector<8x16xi32> to vector<8x16xf32>
    %59 = tpu.concatenate %16, %30, %44, %58 in 0 : vector<8x16xf32>, vector<8x16xf32>, vector<8x16xf32>, vector<8x16xf32> -> vector<32x16xf32>
    %cst_18 = arith.constant dense<0.000000e+00> : vector<32x32xf32>
    %60 = tpu.matmul %59, %3, %cst_18 {dimension_numbers = #tpu.dot_dimension_numbers<[1], [0], [0], [1], [0, 0, 1, 1], [], []>} : vector<32x16xf32>, vector<16x32xf32>, vector<32x32xf32> -> vector<32x32xf32>
    %61 = vector.extract_strided_slice %60 {offsets = [0, 0], sizes = [8, 32], strides = [1, 1]} : vector<32x32xf32> to vector<8x32xf32>
    %62 = vector.extract_strided_slice %60 {offsets = [8, 0], sizes = [8, 32], strides = [1, 1]} : vector<32x32xf32> to vector<8x32xf32>
    %63 = vector.extract_strided_slice %60 {offsets = [16, 0], sizes = [8, 32], strides = [1, 1]} : vector<32x32xf32> to vector<8x32xf32>
    %64 = vector.extract_strided_slice %60 {offsets = [24, 0], sizes = [8, 32], strides = [1, 1]} : vector<32x32xf32> to vector<8x32xf32>
    %65 = tpu.concatenate %61, %62, %63, %64 in 1 : vector<8x32xf32>, vector<8x32xf32>, vector<8x32xf32>, vector<8x32xf32> -> vector<8x128xf32>
    %c0_19 = arith.constant 0 : index
    %c0_20 = arith.constant 0 : index
    %c0_21 = arith.constant 0 : index
    %66 = vector.load %arg3[%c0_19, %c0_20, %c0_21] : memref<2x8x128xf32, #tpu.memory_space<vmem>>, vector<1x8x128xf32>
    %67 = vector.shape_cast %66 : vector<1x8x128xf32> to vector<8x128xf32>
    %68 = vector.shape_cast %65 : vector<8x128xf32> to vector<1x8x128xf32>
    tpu.vector_store %arg3[%c0_19, %c0_20, %c0_21], %68 {strides = array<i32>} : memref<2x8x128xf32, #tpu.memory_space<vmem>>, vector<1x8x128xf32>,
    %69 = tpu.concatenate %12, %26, %40, %54 in 1 : vector<8x1xi32>, vector<8x1xi32>, vector<8x1xi32>, vector<8x1xi32> -> vector<8x4xi32>
    %c0_22 = arith.constant 0 : index
    %c0_23 = arith.constant 0 : index
    %c0_24 = arith.constant 0 : index
    %70 = vector.load %arg4[%c0_22, %c0_23, %c0_24] : memref<2x8x4xi32, #tpu.memory_space<vmem>>, vector<1x8x4xi32>
    %71 = vector.shape_cast %70 : vector<1x8x4xi32> to vector<8x4xi32>
    %72 = vector.shape_cast %69 : vector<8x4xi32> to vector<1x8x4xi32>
    tpu.vector_store %arg4[%c0_22, %c0_23, %c0_24], %72 {strides = array<i32>} : memref<2x8x4xi32, #tpu.memory_space<vmem>>, vector<1x8x4xi32>,
    %c1 = arith.constant 1 : index
    %c0_25 = arith.constant 0 : index
    %c0_26 = arith.constant 0 : index
    %73 = vector.load %arg2[%c1, %c0_25, %c0_26] : memref<2x16x32xf32, #tpu.memory_space<vmem>>, vector<1x16x32xf32>
    %74 = vector.shape_cast %73 : vector<1x16x32xf32> to vector<16x32xf32>
    %cst_27 = arith.constant dense<0.000000e+00> : vector<8x16xf32>
    %75 = tpu.matmul %0, %74, %cst_27 {dimension_numbers = #tpu.dot_dimension_numbers<[1], [1], [0], [0], [0, 0, 1, 0], [], []>} : vector<8x32xf32>, vector<16x32xf32>, vector<8x16xf32> -> vector<8x16xf32>
    %cst_28 = arith.constant dense<0xFF800000> : vector<8xf32>
    %76 = vector.multi_reduction <maximumf>, %75, %cst_28 [1] : vector<8x16xf32> to vector<8xf32>
    %77 = vector.shape_cast %76 : vector<8xf32> to vector<8x1xf32>
    %78 = vector.broadcast %77 : vector<8x1xf32> to vector<8x16xf32>
    %79 = arith.cmpf oge, %75, %78 : vector<8x16xf32>
    %c16_i32_29 = arith.constant 16 : i32
    %80 = vector.broadcast %c16_i32_29 : i32 to vector<8x16xi32>
    %81 = arith.select %79, %1, %80 : vector<8x16xi1>, vector<8x16xi32>
    %cst_30 = arith.constant dense<2147483647> : vector<8xi32>
    %82 = vector.multi_reduction <minsi>, %81, %cst_30 [1] : vector<8x16xi32> to vector<8xi32>
    %83 = vector.shape_cast %82 : vector<8xi32> to vector<8x1xi32>
    %84 = vector.broadcast %83 : vector<8x1xi32> to vector<8x16xi32>
    %85 = arith.cmpi eq, %1, %84 : vector<8x16xi32>
    %86 = arith.extui %85 : vector<8x16xi1> to vector<8x16xi32>
    %87 = arith.sitofp %86 : vector<8x16xi32> to vector<8x16xf32>
    %cst_31 = arith.constant 0xFF800000 : f32
    %88 = vector.broadcast %cst_31 : f32 to vector<8x16xf32>
    %89 = arith.select %85, %88, %75 : vector<8x16xi1>, vector<8x16xf32>
    %cst_32 = arith.constant dense<0xFF800000> : vector<8xf32>
    %90 = vector.multi_reduction <maximumf>, %89, %cst_32 [1] : vector<8x16xf32> to vector<8xf32>
    %91 = vector.shape_cast %90 : vector<8xf32> to vector<8x1xf32>
    %92 = vector.broadcast %91 : vector<8x1xf32> to vector<8x16xf32>
    %93 = arith.cmpf oge, %89, %92 : vector<8x16xf32>
    %c16_i32_33 = arith.constant 16 : i32
    %94 = vector.broadcast %c16_i32_33 : i32 to vector<8x16xi32>
    %95 = arith.select %93, %1, %94 : vector<8x16xi1>, vector<8x16xi32>
    %cst_34 = arith.constant dense<2147483647> : vector<8xi32>
    %96 = vector.multi_reduction <minsi>, %95, %cst_34 [1] : vector<8x16xi32> to vector<8xi32>
    %97 = vector.shape_cast %96 : vector<8xi32> to vector<8x1xi32>
    %98 = vector.broadcast %97 : vector<8x1xi32> to vector<8x16xi32>
    %99 = arith.cmpi eq, %1, %98 : vector<8x16xi32>
    %100 = arith.extui %99 : vector<8x16xi1> to vector<8x16xi32>
    %101 = arith.sitofp %100 : vector<8x16xi32> to vector<8x16xf32>
    %cst_35 = arith.constant 0xFF800000 : f32
    %102 = vector.broadcast %cst_35 : f32 to vector<8x16xf32>
    %103 = arith.select %99, %102, %89 : vector<8x16xi1>, vector<8x16xf32>
    %cst_36 = arith.constant dense<0xFF800000> : vector<8xf32>
    %104 = vector.multi_reduction <maximumf>, %103, %cst_36 [1] : vector<8x16xf32> to vector<8xf32>
    %105 = vector.shape_cast %104 : vector<8xf32> to vector<8x1xf32>
    %106 = vector.broadcast %105 : vector<8x1xf32> to vector<8x16xf32>
    %107 = arith.cmpf oge, %103, %106 : vector<8x16xf32>
    %c16_i32_37 = arith.constant 16 : i32
    %108 = vector.broadcast %c16_i32_37 : i32 to vector<8x16xi32>
    %109 = arith.select %107, %1, %108 : vector<8x16xi1>, vector<8x16xi32>
    %cst_38 = arith.constant dense<2147483647> : vector<8xi32>
    %110 = vector.multi_reduction <minsi>, %109, %cst_38 [1] : vector<8x16xi32> to vector<8xi32>
    %111 = vector.shape_cast %110 : vector<8xi32> to vector<8x1xi32>
    %112 = vector.broadcast %111 : vector<8x1xi32> to vector<8x16xi32>
    %113 = arith.cmpi eq, %1, %112 : vector<8x16xi32>
    %114 = arith.extui %113 : vector<8x16xi1> to vector<8x16xi32>
    %115 = arith.sitofp %114 : vector<8x16xi32> to vector<8x16xf32>
    %cst_39 = arith.constant 0xFF800000 : f32
    %116 = vector.broadcast %cst_39 : f32 to vector<8x16xf32>
    %117 = arith.select %113, %116, %103 : vector<8x16xi1>, vector<8x16xf32>
    %cst_40 = arith.constant dense<0xFF800000> : vector<8xf32>
    %118 = vector.multi_reduction <maximumf>, %117, %cst_40 [1] : vector<8x16xf32> to vector<8xf32>
    %119 = vector.shape_cast %118 : vector<8xf32> to vector<8x1xf32>
    %120 = vector.broadcast %119 : vector<8x1xf32> to vector<8x16xf32>
    %121 = arith.cmpf oge, %117, %120 : vector<8x16xf32>
    %c16_i32_41 = arith.constant 16 : i32
    %122 = vector.broadcast %c16_i32_41 : i32 to vector<8x16xi32>
    %123 = arith.select %121, %1, %122 : vector<8x16xi1>, vector<8x16xi32>
    %cst_42 = arith.constant dense<2147483647> : vector<8xi32>
    %124 = vector.multi_reduction <minsi>, %123, %cst_42 [1] : vector<8x16xi32> to vector<8xi32>
    %125 = vector.shape_cast %124 : vector<8xi32> to vector<8x1xi32>
    %126 = vector.broadcast %125 : vector<8x1xi32> to vector<8x16xi32>
    %127 = arith.cmpi eq, %1, %126 : vector<8x16xi32>
    %128 = arith.extui %127 : vector<8x16xi1> to vector<8x16xi32>
    %129 = arith.sitofp %128 : vector<8x16xi32> to vector<8x16xf32>
    %130 = tpu.concatenate %87, %101, %115, %129 in 0 : vector<8x16xf32>, vector<8x16xf32>, vector<8x16xf32>, vector<8x16xf32> -> vector<32x16xf32>
    %cst_43 = arith.constant dense<0.000000e+00> : vector<32x32xf32>
    %131 = tpu.matmul %130, %74, %cst_43 {dimension_numbers = #tpu.dot_dimension_numbers<[1], [0], [0], [1], [0, 0, 1, 1], [], []>} : vector<32x16xf32>, vector<16x32xf32>, vector<32x32xf32> -> vector<32x32xf32>
    %132 = vector.extract_strided_slice %131 {offsets = [0, 0], sizes = [8, 32], strides = [1, 1]} : vector<32x32xf32> to vector<8x32xf32>
    %133 = vector.extract_strided_slice %131 {offsets = [8, 0], sizes = [8, 32], strides = [1, 1]} : vector<32x32xf32> to vector<8x32xf32>
    %134 = vector.extract_strided_slice %131 {offsets = [16, 0], sizes = [8, 32], strides = [1, 1]} : vector<32x32xf32> to vector<8x32xf32>
    %135 = vector.extract_strided_slice %131 {offsets = [24, 0], sizes = [8, 32], strides = [1, 1]} : vector<32x32xf32> to vector<8x32xf32>
    %136 = tpu.concatenate %132, %133, %134, %135 in 1 : vector<8x32xf32>, vector<8x32xf32>, vector<8x32xf32>, vector<8x32xf32> -> vector<8x128xf32>
    %c1_44 = arith.constant 1 : index
    %c0_45 = arith.constant 0 : index
    %c0_46 = arith.constant 0 : index
    %137 = vector.load %arg3[%c1_44, %c0_45, %c0_46] : memref<2x8x128xf32, #tpu.memory_space<vmem>>, vector<1x8x128xf32>
    %138 = vector.shape_cast %137 : vector<1x8x128xf32> to vector<8x128xf32>
    %139 = vector.shape_cast %136 : vector<8x128xf32> to vector<1x8x128xf32>
    tpu.vector_store %arg3[%c1_44, %c0_45, %c0_46], %139 {strides = array<i32>} : memref<2x8x128xf32, #tpu.memory_space<vmem>>, vector<1x8x128xf32>,
    %140 = tpu.concatenate %83, %97, %111, %125 in 1 : vector<8x1xi32>, vector<8x1xi32>, vector<8x1xi32>, vector<8x1xi32> -> vector<8x4xi32>
    %c1_47 = arith.constant 1 : index
    %c0_48 = arith.constant 0 : index
    %c0_49 = arith.constant 0 : index
    %141 = vector.load %arg4[%c1_47, %c0_48, %c0_49] : memref<2x8x4xi32, #tpu.memory_space<vmem>>, vector<1x8x4xi32>
    %142 = vector.shape_cast %141 : vector<1x8x4xi32> to vector<8x4xi32>
    %143 = vector.shape_cast %140 : vector<8x4xi32> to vector<1x8x4xi32>
    tpu.vector_store %arg4[%c1_47, %c0_48, %c0_49], %143 {strides = array<i32>} : memref<2x8x4xi32, #tpu.memory_space<vmem>>, vector<1x8x4xi32>,
    return
  }
  func.func @transform_0(%arg0: i32) -> (i32, i32) {
    %c0_i32 = arith.constant 0 : i32
    %c0_i32_0 = arith.constant 0 : i32
    %c0_i32_1 = arith.constant 0 : i32
    return %c0_i32, %c0_i32_0 : i32, i32
  }
  func.func @transform_1(%arg0: i32) -> (i32, i32, i32) {
    %c0_i32 = arith.constant 0 : i32
    %c0_i32_0 = arith.constant 0 : i32
    %c0_i32_1 = arith.constant 0 : i32
    return %arg0, %c0_i32, %c0_i32_0 : i32, i32, i32
  }
  func.func @transform_2(%arg0: i32) -> (i32, i32, i32) {
    %c0_i32 = arith.constant 0 : i32
    %c0_i32_0 = arith.constant 0 : i32
    %c0_i32_1 = arith.constant 0 : i32
    return %arg0, %c0_i32, %c0_i32_0 : i32, i32, i32
  }
  func.func @transform_3(%arg0: i32) -> (i32, i32, i32) {
    %c0_i32 = arith.constant 0 : i32
    %c0_i32_0 = arith.constant 0 : i32
    %c0_i32_1 = arith.constant 0 : i32
    return %arg0, %c0_i32, %c0_i32_0 : i32, i32, i32
  }
}

</mosaic_0001>

<llo_original>
// kernel: nodeselection_forward.1
$region0: #{nodeselection_forward.1}
  #allocation0 [shape = 'u32[]', space=smem, size = 0x4, offset = 0x4, fixed_abs, tag = 'smem constant byte address 0x4 - core index']
  #allocation1 [shape = 'u32[144,128]{1,0:T(1,128)}', space=vmem, size = 0x12000, scoped, tag = 'internal scratch']
  %s0 = inlined_call_operand.vmem [shape: f32[8,32], index: 0, kind: input, shape index: {}]
  %s1 = inlined_call_operand.hbm [shape: f32[2,16,32], index: 1, kind: input, shape index: {}]
  %s2 = inlined_call_operand.vmem [shape: f32[2,8,128], index: 2, kind: output, shape index: {0}]
  %s3 = inlined_call_operand.vmem [shape: s32[2,8,4], index: 3, kind: output, shape index: {1}]
  %4 = xla_tuple %s2, %s3
  %s5 = sld [smem:[#allocation0]]
  $region30: #{nodeselection_forward.1} parent=0
    _
  %s7 = ssub.s32 1, %s5
  %s8 = scalar_select 0, %s7, %s5
  $region1: #{nodeselection_forward.1} parent=0
    #allocation2 [shape = 'u8[16384]{0}', space=vmem, size = 0x4000, scoped, tag = 'input window, operand 1, single buffered']
    #allocation3 [shape = 's32[1]{0}', space=sflag, size = 0x4, scoped, tag = 'scoped memory for nodeselection_forward.1']
    %9 = vsyncpa [#allocation3], 0
    // Predicated region
    $region2: #{nodeselection_forward.1} parent=1 // pred_check
      _
    $region3: #{nodeselection_forward.1} parent=1 // pred_check_branch
      %11 = sbr.rel (0) target = $region5
    $region4: #{nodeselection_forward.1} parent=1 // pred_region
      _
    $region5: #{nodeselection_forward.1} parent=1 // pred_fallthru
      _
    // Predicated region
    $region6: #{nodeselection_forward.1} parent=1 // pred_check
      _
    $region7: #{nodeselection_forward.1} parent=1 // pred_check_branch
      %13 = sbr.rel (0) target = $region9
    $region8: #{nodeselection_forward.1} parent=1 // pred_region
      %s15 = ssub.s32 512, 512
      %16 = vsyncadd [#allocation3], %s15
      %s17 = sshll.u32 [#allocation2], 4
      %s18 = int_to_ptr.vmem [resolvable:$true] %s17
      %23 = dma.hbm_to_vmem [thread:$0]  %s1, 512, %s18, [#allocation3], 128, 128, 8
    $region9: #{nodeselection_forward.1} parent=1 // pred_fallthru
      _
    // Predicated region
    $region10: #{nodeselection_forward.1} parent=1 // pred_check
      _
    $region11: #{nodeselection_forward.1} parent=1 // pred_check_branch
      %25 = sbr.rel (0) target = $region13
    $region12: #{nodeselection_forward.1} parent=1 // pred_region
      %26 = dma.done [#allocation3], 512
    $region13: #{nodeselection_forward.1} parent=1 // pred_fallthru
      _
    %v27 = vld [vmem:[%s0] sm:$0xff]
    %v28 = vlaneseq
    %v29 = vand.u32 %v28, 127
    %v30 = vld [vmem:[#allocation2] sm:$0xff]
    %v31 = vld [vmem:[#allocation2 + $0x8] sm:$0xff]
    %vm32 = vcmask 261120
    %v34 = vsel %vm32, %v27, 0
    %v37 = vsel %vm32, %v30, 0
    %v40 = vsel %vm32, %v31, 0
    %42 = vmatprep.subr.mxu0 0.0
    %43 = vmatpush1.xpose.msra.mxu0 %v37
    %44 = vmatprep.subr.mxu0 0.0
    %45 = vmatpush1.xpose.msra.mxu0 %v40
    %46 = vmatprep.subr.mxu0 0.0
    %47 = vmatpush1.xpose.msra.mxu0 0.0
    %48 = vmatprep.subr.mxu0 0.0
    %49 = vmatpush1.xpose.msra.mxu0 0.0
    %50 = vmatprep.subr.mxu0 0.0
    %51 = vmatpush1.xpose.msra.mxu0 0.0
    %52 = vmatprep.subr.mxu0 0.0
    %53 = vmatpush1.xpose.msra.mxu0 0.0
    %54 = vmatprep.subr.mxu0 0.0
    %55 = vmatpush1.xpose.msra.mxu0 0.0
    %56 = vmatprep.subr.mxu0 0.0
    %57 = vmatpush1.xpose.msra.mxu0 0.0
    %58 = vmatprep.subr.mxu0 0.0
    %59 = vmatpush1.xpose.msra.mxu0 0.0
    %60 = vmatprep.subr.mxu0 0.0
    %61 = vmatpush1.xpose.msra.mxu0 0.0
    %62 = vmatprep.subr.mxu0 0.0
    %63 = vmatpush1.xpose.msra.mxu0 0.0
    %64 = vmatprep.subr.mxu0 0.0
    %65 = vmatpush1.xpose.msra.mxu0 0.0
    %66 = vmatprep.subr.mxu0 0.0
    %67 = vmatpush1.xpose.msra.mxu0 0.0
    %68 = vmatprep.subr.mxu0 0.0
    %69 = vmatpush1.xpose.msra.mxu0 0.0
    %70 = vmatprep.subr.mxu0 0.0
    %71 = vmatpush1.xpose.msra.mxu0 0.0
    %72 = vmatprep.subr.mxu0 0.0
    %73 = vmatpush1.xpose.msra.mxu0 0.0
    %74 = vmatprep.subr.mxu0 0.0
    %75 = vmatpush1.xpose.msra.mxu0 0.0
    %76 = vmatprep.subr.mxu0 0.0
    %77 = vmatpush1.xpose.msra.mxu0 0.0
    %78 = vmatprep.subr.mxu0 0.0
    %79 = vmatpush1.xpose.msra.mxu0 0.0
    %80 = vmatprep.subr.mxu0 0.0
    %81 = vmatpush1.xpose.msra.mxu0 0.0
    %82 = vmatprep.subr.mxu0 0.0
    %83 = vmatpush1.xpose.msra.mxu0 0.0
    %84 = vmatprep.subr.mxu0 0.0
    %85 = vmatpush1.xpose.msra.mxu0 0.0
    %86 = vmatprep.subr.mxu0 0.0
    %87 = vmatpush1.xpose.msra.mxu0 0.0
    %88 = vmatprep.subr.mxu0 0.0
    %89 = vmatpush1.xpose.msra.mxu0 0.0
    %90 = vmatprep.subr.mxu0 0.0
    %91 = vmatpush1.xpose.msra.mxu0 0.0
    %92 = vmatprep.subr.mxu0 0.0
    %93 = vmatpush1.xpose.msra.mxu0 0.0
    %94 = vmatprep.subr.mxu0 0.0
    %95 = vmatpush1.xpose.msra.mxu0 0.0
    %96 = vmatprep.subr.mxu0 0.0
    %97 = vmatpush1.xpose.msra.mxu0 0.0
    %98 = vmatprep.subr.mxu0 0.0
    %99 = vmatpush1.xpose.msra.mxu0 0.0
    %100 = vmatprep.subr.mxu0 0.0
    %101 = vmatpush1.xpose.msra.mxu0 0.0
    %102 = vmatprep.subr.mxu0 0.0
    %103 = vmatpush1.xpose.msra.mxu0 0.0
    %104 = vmatprep.subr.mxu0 0.0
    %105 = vmatpush1.xpose.msra.mxu0 0.0
    %106 = vmatprep.mubr.f32.mxu0 0.0
    %107 = vmatmul.mubr.f32.gmra.mrb[0].mxu0 %v34
    %v108 = vpop.f32.mrb[0].mxu0
    %v109 = vadd.f32 0.0, %v108
    %v110 = vpop.f32.mrb[0].mxu0
    %111 = vdwg.mxu0
    %vm112 = vcmask 130048
    %v113 = vsel %vm112, %v109, -inf
    %114 = vmax.xlane.f32.xlu0 %v113
    %v115 = vpop.xlane.xlu0 %114
    %vm116 = vcmp.ge.f32.partialorder %v109, %v115
    %v117 = vsel %vm116, %v29, 16
    %v118 = vsel %vm112, %v117, 2147483647
    %v119 = vand.u32 %v118, 65535
    %v120 = vshra.s32 %v118, 16
    %v121 = vcvt.s32.f32 %v119
    %v122 = vcvt.s32.f32 %v120
    %123 = vmin.xlane.f32.xlu0 %v122
    %v124 = vpop.xlane.xlu0 %123
    %vm125 = vcmp.eq.f32.partialorder %v122, %v124
    %v126 = vsel %vm125, %v121, inf
    %127 = vmin.xlane.f32.xlu0 %v126
    %v128 = vpop.xlane.xlu0 %127
    %v129 = vcvt.f32.s32 %v128
    %v130 = vcvt.f32.s32 %v124
    %v131 = vshll.u32 %v130, 16
    %v132 = vadd.s32 %v131, %v129
    %vm133 = vcmp.eq.s32.totalorder %v29, %v132
    %v134 = vsel %vm133, 1, 0
    %v135 = vcvt.s32.f32 %v134
    %v136 = vsel %vm133, -inf, %v109
    %v137 = vsel %vm112, %v136, -inf
    %138 = vmax.xlane.f32.xlu0 %v137
    %v139 = vpop.xlane.xlu0 %138
    %vm140 = vcmp.ge.f32.partialorder %v136, %v139
    %v141 = vsel %vm140, %v29, 16
    %v142 = vsel %vm112, %v141, 2147483647
    %v143 = vand.u32 %v142, 65535
    %v144 = vshra.s32 %v142, 16
    %v145 = vcvt.s32.f32 %v143
    %v146 = vcvt.s32.f32 %v144
    %147 = vmin.xlane.f32.xlu0 %v146
    %v148 = vpop.xlane.xlu0 %147
    %vm149 = vcmp.eq.f32.partialorder %v146, %v148
    %v150 = vsel %vm149, %v145, inf
    %151 = vmin.xlane.f32.xlu0 %v150
    %v152 = vpop.xlane.xlu0 %151
    %v153 = vcvt.f32.s32 %v152
    %v154 = vcvt.f32.s32 %v148
    %v155 = vshll.u32 %v154, 16
    %v156 = vadd.s32 %v155, %v153
    %vm157 = vcmp.eq.s32.totalorder %v29, %v156
    %v158 = vsel %vm157, 1, 0
    %v159 = vcvt.s32.f32 %v158
    %v160 = vsel %vm157, -inf, %v136
    %v161 = vsel %vm112, %v160, -inf
    %162 = vmax.xlane.f32.xlu0 %v161
    %v163 = vpop.xlane.xlu0 %162
    %vm164 = vcmp.ge.f32.partialorder %v160, %v163
    %v165 = vsel %vm164, %v29, 16
    %v166 = vsel %vm112, %v165, 2147483647
    %v167 = vand.u32 %v166, 65535
    %v168 = vshra.s32 %v166, 16
    %v169 = vcvt.s32.f32 %v167
    %v170 = vcvt.s32.f32 %v168
    %171 = vmin.xlane.f32.xlu0 %v170
    %v172 = vpop.xlane.xlu0 %171
    %vm173 = vcmp.eq.f32.partialorder %v170, %v172
    %v174 = vsel %vm173, %v169, inf
    %175 = vmin.xlane.f32.xlu0 %v174
    %v176 = vpop.xlane.xlu0 %175
    %v177 = vcvt.f32.s32 %v176
    %v178 = vcvt.f32.s32 %v172
    %v179 = vshll.u32 %v178, 16
    %v180 = vadd.s32 %v179, %v177
    %vm181 = vcmp.eq.s32.totalorder %v29, %v180
    %v182 = vsel %vm181, 1, 0
    %v183 = vcvt.s32.f32 %v182
    %v184 = vsel %vm181, -inf, %v160
    %v185 = vsel %vm112, %v184, -inf
    %186 = vmax.xlane.f32.xlu0 %v185
    %v187 = vpop.xlane.xlu0 %186
    %vm188 = vcmp.ge.f32.partialorder %v184, %v187
    %v189 = vsel %vm188, %v29, 16
    %v190 = vsel %vm112, %v189, 2147483647
    %v191 = vand.u32 %v190, 65535
    %v192 = vshra.s32 %v190, 16
    %v193 = vcvt.s32.f32 %v191
    %v194 = vcvt.s32.f32 %v192
    %195 = vmin.xlane.f32.xlu0 %v194
    %v196 = vpop.xlane.xlu0 %195
    %vm197 = vcmp.eq.f32.partialorder %v194, %v196
    %v198 = vsel %vm197, %v193, inf
    %199 = vmin.xlane.f32.xlu0 %v198
    %v200 = vpop.xlane.xlu0 %199
    %v201 = vcvt.f32.s32 %v200
    %v202 = vcvt.f32.s32 %v196
    %v203 = vshll.u32 %v202, 16
    %v204 = vadd.s32 %v203, %v201
    %vm205 = vcmp.eq.s32.totalorder %v29, %v204
    %v206 = vsel %vm205, 1, 0
    %v207 = vcvt.s32.f32 %v206
    %v209 = vsel %vm112, %v135, 0
    %v212 = vsel %vm112, %v159, 0
    %v215 = vsel %vm112, %v183, 0
    %v218 = vsel %vm112, %v207, 0
    %220 = vmatprep.subr.mxu0 0.0
    %221 = vmatpush1.msra.mxu0 %v30
    %222 = vmatprep.subr.mxu0 0.0
    %223 = vmatpush1.msra.mxu0 %v31
    %224 = vmatprep.subr.mxu0 0.0
    %225 = vmatpush1.msra.mxu0 0.0
    %226 = vmatprep.subr.mxu0 0.0
    %227 = vmatpush1.msra.mxu0 0.0
    %228 = vmatprep.subr.mxu0 0.0
    %229 = vmatpush1.msra.mxu0 0.0
    %230 = vmatprep.subr.mxu0 0.0
    %231 = vmatpush1.msra.mxu0 0.0
    %232 = vmatprep.subr.mxu0 0.0
    %233 = vmatpush1.msra.mxu0 0.0
    %234 = vmatprep.subr.mxu0 0.0
    %235 = vmatpush1.msra.mxu0 0.0
    %236 = vmatprep.subr.mxu0 0.0
    %237 = vmatpush1.msra.mxu0 0.0
    %238 = vmatprep.subr.mxu0 0.0
    %239 = vmatpush1.msra.mxu0 0.0
    %240 = vmatprep.subr.mxu0 0.0
    %241 = vmatpush1.msra.mxu0 0.0
    %242 = vmatprep.subr.mxu0 0.0
    %243 = vmatpush1.msra.mxu0 0.0
    %244 = vmatprep.subr.mxu0 0.0
    %245 = vmatpush1.msra.mxu0 0.0
    %246 = vmatprep.subr.mxu0 0.0
    %247 = vmatpush1.msra.mxu0 0.0
    %248 = vmatprep.subr.mxu0 0.0
    %249 = vmatpush1.msra.mxu0 0.0
    %250 = vmatprep.subr.mxu0 0.0
    %251 = vmatpush1.msra.mxu0 0.0
    %252 = vmatprep.subr.mxu0 0.0
    %253 = vmatpush1.msra.mxu0 0.0
    %254 = vmatprep.subr.mxu0 0.0
    %255 = vmatpush1.msra.mxu0 0.0
    %256 = vmatprep.subr.mxu0 0.0
    %257 = vmatpush1.msra.mxu0 0.0
    %258 = vmatprep.subr.mxu0 0.0
    %259 = vmatpush1.msra.mxu0 0.0
    %260 = vmatprep.subr.mxu0 0.0
    %261 = vmatpush1.msra.mxu0 0.0
    %262 = vmatprep.subr.mxu0 0.0
    %263 = vmatpush1.msra.mxu0 0.0
    %264 = vmatprep.subr.mxu0 0.0
    %265 = vmatpush1.msra.mxu0 0.0
    %266 = vmatprep.subr.mxu0 0.0
    %267 = vmatpush1.msra.mxu0 0.0
    %268 = vmatprep.subr.mxu0 0.0
    %269 = vmatpush1.msra.mxu0 0.0
    %270 = vmatprep.subr.mxu0 0.0
    %271 = vmatpush1.msra.mxu0 0.0
    %272 = vmatprep.subr.mxu0 0.0
    %273 = vmatpush1.msra.mxu0 0.0
    %274 = vmatprep.subr.mxu0 0.0
    %275 = vmatpush1.msra.mxu0 0.0
    %276 = vmatprep.subr.mxu0 0.0
    %277 = vmatpush1.msra.mxu0 0.0
    %278 = vmatprep.subr.mxu0 0.0
    %279 = vmatpush1.msra.mxu0 0.0
    %280 = vmatprep.subr.mxu0 0.0
    %281 = vmatpush1.msra.mxu0 0.0
    %282 = vmatprep.subr.mxu0 0.0
    %283 = vmatpush1.msra.mxu0 0.0
    %284 = vmatprep.mubr.f32.mxu0 0.0
    %285 = vmatmul.mubr.f32.gmra.mrb[0].mxu0 %v209
    %v286 = vpop.f32.mrb[0].mxu0
    %v287 = vadd.f32 0.0, %v286
    %v288 = vpop.f32.mrb[0].mxu0
    %289 = vmatprep.mubr.f32.mxu0 0.0
    %290 = vmatmul.mubr.f32.gmra.mrb[0].mxu0 %v212
    %v291 = vpop.f32.mrb[0].mxu0
    %v292 = vadd.f32 0.0, %v291
    %v293 = vpop.f32.mrb[0].mxu0
    %294 = vmatprep.mubr.f32.mxu0 0.0
    %295 = vmatmul.mubr.f32.gmra.mrb[0].mxu0 %v215
    %v296 = vpop.f32.mrb[0].mxu0
    %v297 = vadd.f32 0.0, %v296
    %v298 = vpop.f32.mrb[0].mxu0
    %299 = vmatprep.mubr.f32.mxu0 0.0
    %300 = vmatmul.mubr.f32.gmra.mrb[0].mxu0 %v218
    %v301 = vpop.f32.mrb[0].mxu0
    %v302 = vadd.f32 0.0, %v301
    %v303 = vpop.f32.mrb[0].mxu0
    %304 = vdwg.mxu0
    %306 = vrot.lane.b32.xlu0 %v292, 32
    %v307 = vpop.permute.xlu0 %306
    %310 = vrot.lane.b32.xlu0 %v297, 64
    %v311 = vpop.permute.xlu0 %310
    %314 = vrot.lane.b32.xlu0 %v302, 96
    %v315 = vpop.permute.xlu0 %314
    %v317 = vsel %vm32, %v287, %v307
    %vm318 = vcmask 523264
    %v319 = vsel %vm318, %v317, %v311
    %vm320 = vcmask 785408
    %v321 = vsel %vm320, %v319, %v315
    %322 = vst [vmem:[%s2] sm:$0xff] %v321
    %vm323 = vcmask 7168
    %v324 = vsel %vm323, %v132, %v156
    %vm325 = vcmask 15360
    %v326 = vsel %vm325, %v324, %v180
    %vm327 = vcmask 23552
    %v328 = vsel %vm327, %v326, %v204
    %vm329 = vcmask 31744
    %330 = vst.msk [vmem:[%s3] sm:$0xff] %vm329, %v328
    %s331 = scalar_lea.vmem [#allocation2], 16
    %v332 = vld [vmem:[%s331] sm:$0xff]
    %v333 = vld [vmem:[%s331 + $0x8] sm:$0xff]
    %v335 = vsel %vm32, %v332, 0
    %v338 = vsel %vm32, %v333, 0
    %340 = vmatprep.subr.mxu0 0.0
    %341 = vmatpush1.xpose.msra.mxu0 %v335
    %342 = vmatprep.subr.mxu0 0.0
    %343 = vmatpush1.xpose.msra.mxu0 %v338
    %344 = vmatprep.subr.mxu0 0.0
    %345 = vmatpush1.xpose.msra.mxu0 0.0
    %346 = vmatprep.subr.mxu0 0.0
    %347 = vmatpush1.xpose.msra.mxu0 0.0
    %348 = vmatprep.subr.mxu0 0.0
    %349 = vmatpush1.xpose.msra.mxu0 0.0
    %350 = vmatprep.subr.mxu0 0.0
    %351 = vmatpush1.xpose.msra.mxu0 0.0
    %352 = vmatprep.subr.mxu0 0.0
    %353 = vmatpush1.xpose.msra.mxu0 0.0
    %354 = vmatprep.subr.mxu0 0.0
    %355 = vmatpush1.xpose.msra.mxu0 0.0
    %356 = vmatprep.subr.mxu0 0.0
    %357 = vmatpush1.xpose.msra.mxu0 0.0
    %358 = vmatprep.subr.mxu0 0.0
    %359 = vmatpush1.xpose.msra.mxu0 0.0
    %360 = vmatprep.subr.mxu0 0.0
    %361 = vmatpush1.xpose.msra.mxu0 0.0
    %362 = vmatprep.subr.mxu0 0.0
    %363 = vmatpush1.xpose.msra.mxu0 0.0
    %364 = vmatprep.subr.mxu0 0.0
    %365 = vmatpush1.xpose.msra.mxu0 0.0
    %366 = vmatprep.subr.mxu0 0.0
    %367 = vmatpush1.xpose.msra.mxu0 0.0
    %368 = vmatprep.subr.mxu0 0.0
    %369 = vmatpush1.xpose.msra.mxu0 0.0
    %370 = vmatprep.subr.mxu0 0.0
    %371 = vmatpush1.xpose.msra.mxu0 0.0
    %372 = vmatprep.subr.mxu0 0.0
    %373 = vmatpush1.xpose.msra.mxu0 0.0
    %374 = vmatprep.subr.mxu0 0.0
    %375 = vmatpush1.xpose.msra.mxu0 0.0
    %376 = vmatprep.subr.mxu0 0.0
    %377 = vmatpush1.xpose.msra.mxu0 0.0
    %378 = vmatprep.subr.mxu0 0.0
    %379 = vmatpush1.xpose.msra.mxu0 0.0
    %380 = vmatprep.subr.mxu0 0.0
    %381 = vmatpush1.xpose.msra.mxu0 0.0
    %382 = vmatprep.subr.mxu0 0.0
    %383 = vmatpush1.xpose.msra.mxu0 0.0
    %384 = vmatprep.subr.mxu0 0.0
    %385 = vmatpush1.xpose.msra.mxu0 0.0
    %386 = vmatprep.subr.mxu0 0.0
    %387 = vmatpush1.xpose.msra.mxu0 0.0
    %388 = vmatprep.subr.mxu0 0.0
    %389 = vmatpush1.xpose.msra.mxu0 0.0
    %390 = vmatprep.subr.mxu0 0.0
    %391 = vmatpush1.xpose.msra.mxu0 0.0
    %392 = vmatprep.subr.mxu0 0.0
    %393 = vmatpush1.xpose.msra.mxu0 0.0
    %394 = vmatprep.subr.mxu0 0.0
    %395 = vmatpush1.xpose.msra.mxu0 0.0
    %396 = vmatprep.subr.mxu0 0.0
    %397 = vmatpush1.xpose.msra.mxu0 0.0
    %398 = vmatprep.subr.mxu0 0.0
    %399 = vmatpush1.xpose.msra.mxu0 0.0
    %400 = vmatprep.subr.mxu0 0.0
    %401 = vmatpush1.xpose.msra.mxu0 0.0
    %402 = vmatprep.subr.mxu0 0.0
    %403 = vmatpush1.xpose.msra.mxu0 0.0
    %404 = vmatprep.mubr.f32.mxu0 0.0
    %405 = vmatmul.mubr.f32.gmra.mrb[0].mxu0 %v34
    %v406 = vpop.f32.mrb[0].mxu0
    %v407 = vadd.f32 0.0, %v406
    %v408 = vpop.f32.mrb[0].mxu0
    %409 = vdwg.mxu0
    %v410 = vsel %vm112, %v407, -inf
    %411 = vmax.xlane.f32.xlu0 %v410
    %v412 = vpop.xlane.xlu0 %411
    %vm413 = vcmp.ge.f32.partialorder %v407, %v412
    %v414 = vsel %vm413, %v29, 16
    %v415 = vsel %vm112, %v414, 2147483647
    %v416 = vand.u32 %v415, 65535
    %v417 = vshra.s32 %v415, 16
    %v418 = vcvt.s32.f32 %v416
    %v419 = vcvt.s32.f32 %v417
    %420 = vmin.xlane.f32.xlu0 %v419
    %v421 = vpop.xlane.xlu0 %420
    %vm422 = vcmp.eq.f32.partialorder %v419, %v421
    %v423 = vsel %vm422, %v418, inf
    %424 = vmin.xlane.f32.xlu0 %v423
    %v425 = vpop.xlane.xlu0 %424
    %v426 = vcvt.f32.s32 %v425
    %v427 = vcvt.f32.s32 %v421
    %v428 = vshll.u32 %v427, 16
    %v429 = vadd.s32 %v428, %v426
    %vm430 = vcmp.eq.s32.totalorder %v29, %v429
    %v431 = vsel %vm430, 1, 0
    %v432 = vcvt.s32.f32 %v431
    %v433 = vsel %vm430, -inf, %v407
    %v434 = vsel %vm112, %v433, -inf
    %435 = vmax.xlane.f32.xlu0 %v434
    %v436 = vpop.xlane.xlu0 %435
    %vm437 = vcmp.ge.f32.partialorder %v433, %v436
    %v438 = vsel %vm437, %v29, 16
    %v439 = vsel %vm112, %v438, 2147483647
    %v440 = vand.u32 %v439, 65535
    %v441 = vshra.s32 %v439, 16
    %v442 = vcvt.s32.f32 %v440
    %v443 = vcvt.s32.f32 %v441
    %444 = vmin.xlane.f32.xlu0 %v443
    %v445 = vpop.xlane.xlu0 %444
    %vm446 = vcmp.eq.f32.partialorder %v443, %v445
    %v447 = vsel %vm446, %v442, inf
    %448 = vmin.xlane.f32.xlu0 %v447
    %v449 = vpop.xlane.xlu0 %448
    %v450 = vcvt.f32.s32 %v449
    %v451 = vcvt.f32.s32 %v445
    %v452 = vshll.u32 %v451, 16
    %v453 = vadd.s32 %v452, %v450
    %vm454 = vcmp.eq.s32.totalorder %v29, %v453
    %v455 = vsel %vm454, 1, 0
    %v456 = vcvt.s32.f32 %v455
    %v457 = vsel %vm454, -inf, %v433
    %v458 = vsel %vm112, %v457, -inf
    %459 = vmax.xlane.f32.xlu0 %v458
    %v460 = vpop.xlane.xlu0 %459
    %vm461 = vcmp.ge.f32.partialorder %v457, %v460
    %v462 = vsel %vm461, %v29, 16
    %v463 = vsel %vm112, %v462, 2147483647
    %v464 = vand.u32 %v463, 65535
    %v465 = vshra.s32 %v463, 16
    %v466 = vcvt.s32.f32 %v464
    %v467 = vcvt.s32.f32 %v465
    %468 = vmin.xlane.f32.xlu0 %v467
    %v469 = vpop.xlane.xlu0 %468
    %vm470 = vcmp.eq.f32.partialorder %v467, %v469
    %v471 = vsel %vm470, %v466, inf
    %472 = vmin.xlane.f32.xlu0 %v471
    %v473 = vpop.xlane.xlu0 %472
    %v474 = vcvt.f32.s32 %v473
    %v475 = vcvt.f32.s32 %v469
    %v476 = vshll.u32 %v475, 16
    %v477 = vadd.s32 %v476, %v474
    %vm478 = vcmp.eq.s32.totalorder %v29, %v477
    %v479 = vsel %vm478, 1, 0
    %v480 = vcvt.s32.f32 %v479
    %v481 = vsel %vm478, -inf, %v457
    %v482 = vsel %vm112, %v481, -inf
    %483 = vmax.xlane.f32.xlu0 %v482
    %v484 = vpop.xlane.xlu0 %483
    %vm485 = vcmp.ge.f32.partialorder %v481, %v484
    %v486 = vsel %vm485, %v29, 16
    %v487 = vsel %vm112, %v486, 2147483647
    %v488 = vand.u32 %v487, 65535
    %v489 = vshra.s32 %v487, 16
    %v490 = vcvt.s32.f32 %v488
    %v491 = vcvt.s32.f32 %v489
    %492 = vmin.xlane.f32.xlu0 %v491
    %v493 = vpop.xlane.xlu0 %492
    %vm494 = vcmp.eq.f32.partialorder %v491, %v493
    %v495 = vsel %vm494, %v490, inf
    %496 = vmin.xlane.f32.xlu0 %v495
    %v497 = vpop.xlane.xlu0 %496
    %v498 = vcvt.f32.s32 %v497
    %v499 = vcvt.f32.s32 %v493
    %v500 = vshll.u32 %v499, 16
    %v501 = vadd.s32 %v500, %v498
    %vm502 = vcmp.eq.s32.totalorder %v29, %v501
    %v503 = vsel %vm502, 1, 0
    %v504 = vcvt.s32.f32 %v503
    %v506 = vsel %vm112, %v432, 0
    %v509 = vsel %vm112, %v456, 0
    %v512 = vsel %vm112, %v480, 0
    %v515 = vsel %vm112, %v504, 0
    %517 = vmatprep.subr.mxu0 0.0
    %518 = vmatpush1.msra.mxu0 %v332
    %519 = vmatprep.subr.mxu0 0.0
    %520 = vmatpush1.msra.mxu0 %v333
    %521 = vmatprep.subr.mxu0 0.0
    %522 = vmatpush1.msra.mxu0 0.0
    %523 = vmatprep.subr.mxu0 0.0
    %524 = vmatpush1.msra.mxu0 0.0
    %525 = vmatprep.subr.mxu0 0.0
    %526 = vmatpush1.msra.mxu0 0.0
    %527 = vmatprep.subr.mxu0 0.0
    %528 = vmatpush1.msra.mxu0 0.0
    %529 = vmatprep.subr.mxu0 0.0
    %530 = vmatpush1.msra.mxu0 0.0
    %531 = vmatprep.subr.mxu0 0.0
    %532 = vmatpush1.msra.mxu0 0.0
    %533 = vmatprep.subr.mxu0 0.0
    %534 = vmatpush1.msra.mxu0 0.0
    %535 = vmatprep.subr.mxu0 0.0
    %536 = vmatpush1.msra.mxu0 0.0
    %537 = vmatprep.subr.mxu0 0.0
    %538 = vmatpush1.msra.mxu0 0.0
    %539 = vmatprep.subr.mxu0 0.0
    %540 = vmatpush1.msra.mxu0 0.0
    %541 = vmatprep.subr.mxu0 0.0
    %542 = vmatpush1.msra.mxu0 0.0
    %543 = vmatprep.subr.mxu0 0.0
    %544 = vmatpush1.msra.mxu0 0.0
    %545 = vmatprep.subr.mxu0 0.0
    %546 = vmatpush1.msra.mxu0 0.0
    %547 = vmatprep.subr.mxu0 0.0
    %548 = vmatpush1.msra.mxu0 0.0
    %549 = vmatprep.subr.mxu0 0.0
    %550 = vmatpush1.msra.mxu0 0.0
    %551 = vmatprep.subr.mxu0 0.0
    %552 = vmatpush1.msra.mxu0 0.0
    %553 = vmatprep.subr.mxu0 0.0
    %554 = vmatpush1.msra.mxu0 0.0
    %555 = vmatprep.subr.mxu0 0.0
    %556 = vmatpush1.msra.mxu0 0.0
    %557 = vmatprep.subr.mxu0 0.0
    %558 = vmatpush1.msra.mxu0 0.0
    %559 = vmatprep.subr.mxu0 0.0
    %560 = vmatpush1.msra.mxu0 0.0
    %561 = vmatprep.subr.mxu0 0.0
    %562 = vmatpush1.msra.mxu0 0.0
    %563 = vmatprep.subr.mxu0 0.0
    %564 = vmatpush1.msra.mxu0 0.0
    %565 = vmatprep.subr.mxu0 0.0
    %566 = vmatpush1.msra.mxu0 0.0
    %567 = vmatprep.subr.mxu0 0.0
    %568 = vmatpush1.msra.mxu0 0.0
    %569 = vmatprep.subr.mxu0 0.0
    %570 = vmatpush1.msra.mxu0 0.0
    %571 = vmatprep.subr.mxu0 0.0
    %572 = vmatpush1.msra.mxu0 0.0
    %573 = vmatprep.subr.mxu0 0.0
    %574 = vmatpush1.msra.mxu0 0.0
    %575 = vmatprep.subr.mxu0 0.0
    %576 = vmatpush1.msra.mxu0 0.0
    %577 = vmatprep.subr.mxu0 0.0
    %578 = vmatpush1.msra.mxu0 0.0
    %579 = vmatprep.subr.mxu0 0.0
    %580 = vmatpush1.msra.mxu0 0.0
    %581 = vmatprep.mubr.f32.mxu0 0.0
    %582 = vmatmul.mubr.f32.gmra.mrb[0].mxu0 %v506
    %v583 = vpop.f32.mrb[0].mxu0
    %v584 = vadd.f32 0.0, %v583
    %v585 = vpop.f32.mrb[0].mxu0
    %586 = vmatprep.mubr.f32.mxu0 0.0
    %587 = vmatmul.mubr.f32.gmra.mrb[0].mxu0 %v509
    %v588 = vpop.f32.mrb[0].mxu0
    %v589 = vadd.f32 0.0, %v588
    %v590 = vpop.f32.mrb[0].mxu0
    %591 = vmatprep.mubr.f32.mxu0 0.0
    %592 = vmatmul.mubr.f32.gmra.mrb[0].mxu0 %v512
    %v593 = vpop.f32.mrb[0].mxu0
    %v594 = vadd.f32 0.0, %v593
    %v595 = vpop.f32.mrb[0].mxu0
    %596 = vmatprep.mubr.f32.mxu0 0.0
    %597 = vmatmul.mubr.f32.gmra.mrb[0].mxu0 %v515
    %v598 = vpop.f32.mrb[0].mxu0
    %v599 = vadd.f32 0.0, %v598
    %v600 = vpop.f32.mrb[0].mxu0
    %601 = vdwg.mxu0
    %603 = vrot.lane.b32.xlu0 %v589, 32
    %v604 = vpop.permute.xlu0 %603
    %607 = vrot.lane.b32.xlu0 %v594, 64
    %v608 = vpop.permute.xlu0 %607
    %611 = vrot.lane.b32.xlu0 %v599, 96
    %v612 = vpop.permute.xlu0 %611
    %v614 = vsel %vm32, %v584, %v604
    %v615 = vsel %vm318, %v614, %v608
    %v616 = vsel %vm320, %v615, %v612
    %s617 = scalar_lea.vmem %s2, 8
    %618 = vst [vmem:[%s617] sm:$0xff] %v616
    %v619 = vsel %vm323, %v429, %v453
    %v620 = vsel %vm325, %v619, %v477
    %v621 = vsel %vm327, %v620, %v501
    %s622 = scalar_lea.vmem %s3, 8
    %623 = vst.msk [vmem:[%s622] sm:$0xff] %vm329, %v621
    // Predicated region
    $region14: #{nodeselection_forward.1} parent=1 // pred_check
      _
    $region15: #{nodeselection_forward.1} parent=1 // pred_check_branch
      %625 = sbr.rel (0) target = $region17
    $region16: #{nodeselection_forward.1} parent=1 // pred_region
      _
    $region17: #{nodeselection_forward.1} parent=1 // pred_fallthru
      _
    // Predicated region
    $region18: #{nodeselection_forward.1} parent=1 // pred_check
      _
    $region19: #{nodeselection_forward.1} parent=1 // pred_check_branch
      %627 = sbr.rel (0) target = $region21
    $region20: #{nodeselection_forward.1} parent=1 // pred_region
      _
    $region21: #{nodeselection_forward.1} parent=1 // pred_fallthru
      _
    // Predicated region
    $region22: #{nodeselection_forward.1} parent=1 // pred_check
      _
    $region23: #{nodeselection_forward.1} parent=1 // pred_check_branch
      %629 = sbr.rel (0) target = $region25
    $region24: #{nodeselection_forward.1} parent=1 // pred_region
      _
    $region25: #{nodeselection_forward.1} parent=1 // pred_fallthru
      _
    // Predicated region
    $region26: #{nodeselection_forward.1} parent=1 // pred_check
      _
    $region27: #{nodeselection_forward.1} parent=1 // pred_check_branch
      %631 = sbr.rel (0) target = $region29
    $region28: #{nodeselection_forward.1} parent=1 // pred_region
      _
    $region29: #{nodeselection_forward.1} parent=1 // pred_fallthru
      _
    %632 = vsyncpa [#allocation3], 1

</llo_original>
